<compile_context>
chip_gen: v5e
topology: v5e:2x2
jax: 0.10.0
libtpu: 0.0.40
codegen_flags: <defaults>
</compile_context>

<pallas_src>
import functools

import jax
import jax.numpy as jnp
from jax.experimental import pallas as pl
from jax.experimental.pallas import tpu as pltpu

# Safe scoped-VMEM limit on every generation (<= 64 MiB physical on v7x, raises the
# 16/32 MiB defaults on v5e/v6e) while far above what the chosen tiles need (~6-16 MiB).
_VMEM_LIMIT = 48 * 1024 * 1024


# ---------------------------------------------------------------------------
# helpers
# ---------------------------------------------------------------------------

def _pick_tile(dim, target, align):
    """Largest multiple of `align` that divides `dim` and is <= target; else full dim."""
    t = (min(dim, target) // align) * align
    while t >= align:
        if dim % t == 0:
            return t
        t -= align
    return dim


def _row_f32(p):
    """Biases / LN params as (1, N) f32 (no-op for params already stored that way)."""
    p = jnp.asarray(p)
    if p.ndim == 1:
        p = p.reshape(1, -1)
    return p.astype(jnp.float32)


def _gelu(y):
    # GPT-2 tanh-approximate GELU (f32 math on the VPU/EUP).
    return 0.5 * y * (1.0 + jnp.tanh(0.7978845608028654 * (y + 0.044715 * y * y * y)))


def _ln(x_f32, g_ref, b_ref, eps):
    mu = jnp.mean(x_f32, axis=-1, keepdims=True)
    var = jnp.mean(jnp.square(x_f32 - mu), axis=-1, keepdims=True)
    return (x_f32 - mu) * jax.lax.rsqrt(var + eps) * g_ref[...] + b_ref[...]


# ---------------------------------------------------------------------------
# Tiled linear: (M,K) @ (K,N) + b [+ residual], bf16 operands, f32 accumulate
# ---------------------------------------------------------------------------

def _matmul_kernel(*refs, activation, has_residual):
    if has_residual:
        x_ref, w_ref, b_ref, r_ref, o_ref, acc_ref = refs
    else:
        x_ref, w_ref, b_ref, o_ref, acc_ref = refs
        r_ref = None
    k = pl.program_id(2)

    @pl.when(k == 0)
    def _():
        acc_ref[...] = jnp.zeros_like(acc_ref)

    acc_ref[...] += jnp.dot(x_ref[...], w_ref[...], preferred_element_type=jnp.float32)

    @pl.when(k == pl.num_programs(2) - 1)
    def _():
        y = acc_ref[...] + b_ref[...]
        if activation == "gelu":
            y = _gelu(y)
        if has_residual:
            y = y + r_ref[...].astype(jnp.float32)
        o_ref[...] = y.astype(o_ref.dtype)


def linear(x, w, b, *, activation=None, residual=None):
    M, K = x.shape
    K2, N = w.shape
    assert K == K2
    tm = _pick_tile(M, 512, 8)
    tn = _pick_tile(N, 512, 128)
    tk = _pick_tile(K, 512, 128)
    has_res = residual is not None
    kernel = functools.partial(_matmul_kernel, activation=activation, has_residual=has_res)

    in_specs = [
        pl.BlockSpec((tm, tk), lambda i, j, k: (i, k)),
        pl.BlockSpec((tk, tn), lambda i, j, k: (k, j)),
        pl.BlockSpec((1, tn), lambda i, j, k: (0, j)),
    ]
    args = [x, w, _row_f32(b)]
    if has_res:
        in_specs.append(pl.BlockSpec((tm, tn), lambda i, j, k: (i, j)))
        args.append(residual)

    return pl.pallas_call(
        kernel,
        out_shape=jax.ShapeDtypeStruct((M, N), jnp.bfloat16),
        grid_spec=pltpu.PrefetchScalarGridSpec(
            num_scalar_prefetch=0,
            grid=(M // tm, N // tn, K // tk),
            in_specs=in_specs,
            out_specs=pl.BlockSpec((tm, tn), lambda i, j, k: (i, j)),
            scratch_shapes=[pltpu.VMEM((tm, tn), jnp.float32)],
        ),
        compiler_params=pltpu.CompilerParams(
            dimension_semantics=("parallel", "parallel", "arbitrary"),
            vmem_limit_bytes=_VMEM_LIMIT),
    )(*args)


# ---------------------------------------------------------------------------
# Fused LayerNorm + linear (LN hoisted: computed once per M tile at j==0)
# ---------------------------------------------------------------------------

def _ln_matmul_kernel(x_ref, g_ref, bb_ref, w_ref, b_ref, o_ref, xn_ref, *, eps):
    @pl.when(pl.program_id(1) == 0)
    def _():
        xn = _ln(x_ref[...].astype(jnp.float32), g_ref, bb_ref, eps)
        xn_ref[...] = xn.astype(xn_ref.dtype)

    y = jnp.dot(xn_ref[...], w_ref[...], preferred_element_type=jnp.float32) + b_ref[...]
    o_ref[...] = y.astype(o_ref.dtype)


def ln_linear(x, gamma, beta, w, b, *, eps=1e-5):
    M, K = x.shape
    _, N = w.shape
    tm = _pick_tile(M, 512, 8)
    tn = _pick_tile(N, 512, 128)
    kernel = functools.partial(_ln_matmul_kernel, eps=eps)
    return pl.pallas_call(
        kernel,
        out_shape=jax.ShapeDtypeStruct((M, N), jnp.bfloat16),
        grid_spec=pltpu.PrefetchScalarGridSpec(
            num_scalar_prefetch=0,
            grid=(M // tm, N // tn),
            in_specs=[
                pl.BlockSpec((tm, K), lambda i, j: (i, 0)),
                pl.BlockSpec((1, K), lambda i, j: (0, 0)),
                pl.BlockSpec((1, K), lambda i, j: (0, 0)),
                pl.BlockSpec((K, tn), lambda i, j: (0, j)),
                pl.BlockSpec((1, tn), lambda i, j: (0, j)),
            ],
            out_specs=pl.BlockSpec((tm, tn), lambda i, j: (i, j)),
            scratch_shapes=[pltpu.VMEM((tm, K), jnp.bfloat16)],
        ),
        compiler_params=pltpu.CompilerParams(
            dimension_semantics=("parallel", "arbitrary"),
            vmem_limit_bytes=_VMEM_LIMIT),
    )(x, _row_f32(gamma), _row_f32(beta), w, _row_f32(b))


# ---------------------------------------------------------------------------
# Fused FFN block: out = x + (GELU(LN(x) @ W1 + b1) @ W2 + b2), tiled over FFN dim
# ---------------------------------------------------------------------------

def _ffn_kernel(x_ref, g_ref, bb_ref, w1_ref, b1_ref, w2_ref, b2_ref,
                o_ref, xn_ref, acc_ref, *, eps):
    f = pl.program_id(1)

    @pl.when(f == 0)
    def _():
        xn = _ln(x_ref[...].astype(jnp.float32), g_ref, bb_ref, eps)
        xn_ref[...] = xn.astype(xn_ref.dtype)
        acc_ref[...] = jnp.zeros_like(acc_ref)

    h = jnp.dot(xn_ref[...], w1_ref[...], preferred_element_type=jnp.float32) + b1_ref[...]
    h = _gelu(h)
    acc_ref[...] += jnp.dot(h.astype(w2_ref.dtype), w2_ref[...],
                            preferred_element_type=jnp.float32)

    @pl.when(f == pl.num_programs(1) - 1)
    def _():
        o_ref[...] = (acc_ref[...] + b2_ref[...]
                      + x_ref[...].astype(jnp.float32)).astype(o_ref.dtype)


def ffn_block(x, gamma, beta, w1, b1, w2, b2, *, eps=1e-5):
    M, H = x.shape
    F = w1.shape[1]
    tm = _pick_tile(M, 512, 8)
    tf = _pick_tile(F, 512, 128)
    kernel = functools.partial(_ffn_kernel, eps=eps)
    return pl.pallas_call(
        kernel,
        out_shape=jax.ShapeDtypeStruct((M, H), jnp.bfloat16),
        grid_spec=pltpu.PrefetchScalarGridSpec(
            num_scalar_prefetch=0,
            grid=(M // tm, F // tf),
            in_specs=[
                pl.BlockSpec((tm, H), lambda i, f: (i, 0)),
                pl.BlockSpec((1, H), lambda i, f: (0, 0)),
                pl.BlockSpec((1, H), lambda i, f: (0, 0)),
                pl.BlockSpec((H, tf), lambda i, f: (0, f)),
                pl.BlockSpec((1, tf), lambda i, f: (0, f)),
                pl.BlockSpec((tf, H), lambda i, f: (f, 0)),
                pl.BlockSpec((1, H), lambda i, f: (0, 0)),
            ],
            out_specs=pl.BlockSpec((tm, H), lambda i, f: (i, 0)),
            scratch_shapes=[pltpu.VMEM((tm, H), jnp.bfloat16),
                            pltpu.VMEM((tm, H), jnp.float32)],
        ),
        compiler_params=pltpu.CompilerParams(
            dimension_semantics=("parallel", "arbitrary"),
            vmem_limit_bytes=_VMEM_LIMIT),
    )(x, _row_f32(gamma), _row_f32(beta),
      w1, _row_f32(b1), w2, _row_f32(b2))


# ---------------------------------------------------------------------------
# Flash-style multi-head attention
#   grid (B, q-tile, kv-tile); online softmax; heads sliced from lane-dense (T,H)
#   blocks inside the kernel (no split/merge-heads transposes in HBM).
#   When H % 128 == 0 the kernel reads q/k/v straight from the fused QKV / KV
#   projection buffer via column-offset index maps.
# ---------------------------------------------------------------------------

def _flash_mha_kernel(*refs, scale, causal, has_lens, num_heads, head_dim, tq, tkv):
    if has_lens:
        lens_ref, q_ref, k_ref, v_ref, o_ref, m_ref, l_ref, acc_ref = refs
    else:
        q_ref, k_ref, v_ref, o_ref, m_ref, l_ref, acc_ref = refs
        lens_ref = None

    qi = pl.program_id(1)
    ki = pl.program_id(2)

    @pl.when(ki == 0)
    def _():
        m_ref[...] = jnp.full_like(m_ref, -jnp.inf)
        l_ref[...] = jnp.zeros_like(l_ref)
        acc_ref[...] = jnp.zeros_like(acc_ref)

    def process_block():
        q = q_ref[...]                      # (tq,  H) bf16
        k = k_ref[...]                      # (tkv, H) bf16
        v = v_ref[...]                      # (tkv, H) bf16

        # positional mask shared by all heads, built in-registers
        q_pos = qi * tq + jax.lax.broadcasted_iota(jnp.int32, (tq, tkv), 0)
        kv_pos = ki * tkv + jax.lax.broadcasted_iota(jnp.int32, (tq, tkv), 1)
        mask = None
        if causal:
            mask = kv_pos <= q_pos
        if has_lens:
            b = pl.program_id(0)
            lm = kv_pos < lens_ref[b]
            mask = lm if mask is None else jnp.logical_and(mask, lm)

        for h in range(num_heads):
            sl = slice(h * head_dim, (h + 1) * head_dim)
            s = jax.lax.dot_general(
                q[:, sl], k[:, sl],
                dimension_numbers=(((1,), (1,)), ((), ())),
                preferred_element_type=jnp.float32) * scale           # (tq, tkv)
            if mask is not None:
                s = jnp.where(mask, s, jnp.float32(-1e30))
            m_prev = m_ref[h]                                         # (tq, 1)
            m_new = jnp.maximum(m_prev, jnp.max(s, axis=-1, keepdims=True))
            alpha = jnp.exp(m_prev - m_new)
            p = jnp.exp(s - m_new)
            l_ref[h] = alpha * l_ref[h] + jnp.sum(p, axis=-1, keepdims=True)
            acc_ref[:, sl] = alpha * acc_ref[:, sl] + jnp.dot(
                p.astype(v.dtype), v[:, sl], preferred_element_type=jnp.float32)
            m_ref[h] = m_new

    if causal:
        # skip kv tiles that lie entirely above the diagonal
        pl.when(ki * tkv <= qi * tq + tq - 1)(process_block)
    else:
        process_block()

    @pl.when(ki == pl.num_programs(2) - 1)
    def _():
        for h in range(num_heads):
            sl = slice(h * head_dim, (h + 1) * head_dim)
            inv = pl.reciprocal(l_ref[h], approx=True)     # EUP slot, frees VALU
            o_ref[:, sl] = (acc_ref[:, sl] * inv).astype(o_ref.dtype)


def flash_mha(q_arr, k_arr, v_arr, *, num_heads, hidden, causal,
              kv_lengths=None, q_col=0, k_col=0, v_col=0):
    """q_arr: (B,T,Wq), k_arr/v_arr: (B,S,Wk) bf16. The attended H-wide slice of each
    array starts at column block {q,k,v}_col * hidden (so the fused QKV / KV projection
    output can be consumed directly when hidden % 128 == 0). Output: (B,T,hidden) bf16."""
    B, T, _ = q_arr.shape
    S = k_arr.shape[1]
    D = hidden // num_heads
    tq = _pick_tile(T, 256, 8)
    tkv = _pick_tile(S, 256, 8)
    has_lens = kv_lengths is not None
    kernel = functools.partial(
        _flash_mha_kernel, scale=float(D) ** -0.5, causal=causal, has_lens=has_lens,
        num_heads=num_heads, head_dim=D, tq=tq, tkv=tkv)

    in_specs = [
        pl.BlockSpec((None, tq, hidden), lambda b, qi, ki, *_: (b, qi, q_col)),
        pl.BlockSpec((None, tkv, hidden), lambda b, qi, ki, *_: (b, ki, k_col)),
        pl.BlockSpec((None, tkv, hidden), lambda b, qi, ki, *_: (b, ki, v_col)),
    ]
    args = (q_arr, k_arr, v_arr)
    if has_lens:
        args = (kv_lengths.astype(jnp.int32),) + args

    return pl.pallas_call(
        kernel,
        out_shape=jax.ShapeDtypeStruct((B, T, hidden), jnp.bfloat16),
        grid_spec=pltpu.PrefetchScalarGridSpec(
            num_scalar_prefetch=1 if has_lens else 0,
            grid=(B, T // tq, S // tkv),
            in_specs=in_specs,
            out_specs=pl.BlockSpec((None, tq, hidden), lambda b, qi, ki, *_: (b, qi, 0)),
            scratch_shapes=[pltpu.VMEM((num_heads, tq, 1), jnp.float32),   # m
                            pltpu.VMEM((num_heads, tq, 1), jnp.float32),   # l
                            pltpu.VMEM((tq, hidden), jnp.float32)],        # acc
        ),
        compiler_params=pltpu.CompilerParams(
            dimension_semantics=("parallel", "parallel", "arbitrary"),
            vmem_limit_bytes=_VMEM_LIMIT),
    )(*args)
    # TODO(synk): lay K as (D, S) so the D=64 contraction sits on the sublane axis
    #             (recovers MXU occupancy on v6e/v7x's 256-wide MXU).


# ---------------------------------------------------------------------------
# Fused final LN + tied-embedding projection + running argmax
#   contracts against a pre-transposed (H, V) table -> no in-kernel weight transpose.
# ---------------------------------------------------------------------------

def _logits_kernel(x_ref, g_ref, bb_ref, et_ref, o_ref, idx_ref,
                   xn_ref, max_ref, arg_ref, *, eps, tv):
    v = pl.program_id(1)

    @pl.when(v == 0)
    def _():
        xn = _ln(x_ref[...].astype(jnp.float32), g_ref, bb_ref, eps)
        xn_ref[...] = xn.astype(xn_ref.dtype)
        max_ref[...] = jnp.full_like(max_ref, -jnp.inf)
        arg_ref[...] = jnp.zeros_like(arg_ref)

    logits = jnp.dot(xn_ref[...], et_ref[...], preferred_element_type=jnp.float32)
    o_ref[...] = logits.astype(o_ref.dtype)

    # running argmax over vocab tiles (first-occurrence semantics, like torch.argmax)
    tile_max = jnp.max(logits, axis=-1, keepdims=True)
    col = jax.lax.broadcasted_iota(jnp.int32, logits.shape, 1)
    local_idx = jnp.min(jnp.where(logits == tile_max, col, logits.shape[1]),
                        axis=-1, keepdims=True)
    better = tile_max > max_ref[...]
    arg_ref[...] = jnp.where(better, v * tv + local_idx, arg_ref[...])
    max_ref[...] = jnp.maximum(max_ref[...], tile_max)

    @pl.when(v == pl.num_programs(1) - 1)
    def _():
        idx_ref[...] = arg_ref[...]


def logits_and_argmax(x, gamma, beta, emb_t, *, eps=1e-5, logits_dtype=jnp.float32):
    """x: (M,H) bf16; emb_t: (H,V) bf16 (pre-transposed tied embedding)."""
    M, H = x.shape
    V = emb_t.shape[1]
    tm = _pick_tile(M, 512, 8)
    tv = _pick_tile(V, 512, 128)
    kernel = functools.partial(_logits_kernel, eps=eps, tv=tv)
    return pl.pallas_call(
        kernel,
        out_shape=(jax.ShapeDtypeStruct((M, V), logits_dtype),
                   jax.ShapeDtypeStruct((M, 1), jnp.int32)),
        grid_spec=pltpu.PrefetchScalarGridSpec(
            num_scalar_prefetch=0,
            grid=(M // tm, V // tv),
            in_specs=[
                pl.BlockSpec((tm, H), lambda i, v: (i, 0)),
                pl.BlockSpec((1, H), lambda i, v: (0, 0)),
                pl.BlockSpec((1, H), lambda i, v: (0, 0)),
                pl.BlockSpec((H, tv), lambda i, v: (0, v)),
            ],
            out_specs=[
                pl.BlockSpec((tm, tv), lambda i, v: (i, v)),
                pl.BlockSpec((tm, 1), lambda i, v: (i, 0)),
            ],
            scratch_shapes=[pltpu.VMEM((tm, H), jnp.bfloat16),
                            pltpu.VMEM((tm, 1), jnp.float32),
                            pltpu.VMEM((tm, 1), jnp.int32)],
        ),
        compiler_params=pltpu.CompilerParams(
            dimension_semantics=("parallel", "arbitrary"),
            vmem_limit_bytes=_VMEM_LIMIT),
    )(x, _row_f32(gamma), _row_f32(beta), emb_t)


# ---------------------------------------------------------------------------
# GPT2Decoder forward (train_greedy) built from the kernels above
# ---------------------------------------------------------------------------

def gpt2_decoder_forward(params, inputs, memory, memory_sequence_length):
    B, T = inputs.shape
    V, H = params["word_emb"].shape
    NH = params["num_heads"]
    S = memory.shape[1]
    # If H is lane-aligned the attention kernel reads q/k/v straight from the fused
    # projection buffers via column-offset BlockSpecs (no split copies at all).
    fused_cols = (H % 128 == 0)

    h = (params["word_emb"][inputs] + params["pos_emb"][:T][None, :, :]).astype(jnp.bfloat16)
    h = h.reshape(B * T, H)
    mem_flat = memory.reshape(B * S, H).astype(jnp.bfloat16)
    mem_len = memory_sequence_length.astype(jnp.int32)

    for layer in params["layers"]:
        # --- causal self-attention (fused LN+QKV; flash attention; residual in out-proj) ---
        qkv = ln_linear(h, layer["ln1_g"], layer["ln1_b"], layer["wqkv"], layer["bqkv"])
        if fused_cols:
            qkv3 = qkv.reshape(B, T, 3 * H)
            a = flash_mha(qkv3, qkv3, qkv3, num_heads=NH, hidden=H, causal=True,
                          q_col=0, k_col=1, v_col=2)
        else:
            q, k, v = jnp.split(qkv, 3, axis=-1)
            a = flash_mha(q.reshape(B, T, H), k.reshape(B, T, H), v.reshape(B, T, H),
                          num_heads=NH, hidden=H, causal=True)
        h = linear(a.reshape(B * T, H), layer["wo"], layer["bo"], residual=h)

        # --- cross-attention to encoder memory (key-padding mask from lengths) ---
        qc = ln_linear(h, layer["lnc_g"], layer["lnc_b"], layer["wq_c"], layer["bq_c"])
        kvc = linear(mem_flat, layer["wkv_c"], layer["bkv_c"])
        qc3 = qc.reshape(B, T, H)
        if fused_cols:
            kv3 = kvc.reshape(B, S, 2 * H)
            a = flash_mha(qc3, kv3, kv3, num_heads=NH, hidden=H, causal=False,
                          kv_lengths=mem_len, k_col=0, v_col=1)
        else:
            kc, vc = jnp.split(kvc, 2, axis=-1)
            a = flash_mha(qc3, kc.reshape(B, S, H), vc.reshape(B, S, H),
                          num_heads=NH, hidden=H, causal=False, kv_lengths=mem_len)
        h = linear(a.reshape(B * T, H), layer["wo_c"], layer["bo_c"], residual=h)

        # --- fused position-wise feed-forward (LN + W1 + GELU + W2 + residual) ---
        h = ffn_block(h, layer["ln2_g"], layer["ln2_b"],
                      layer["w1"], layer["b1"], layer["w2"], layer["b2"])

    emb_t = params.get("word_emb_t")
    if emb_t is None:
        emb_t = params["word_emb"].T     # one-time; prefer caching in params
    logits, ids = logits_and_argmax(h, params["lnf_g"], params["lnf_b"], emb_t)
    logits = logits.reshape(B, T, V).astype(jnp.float32)
    sample_id = ids.reshape(B, T).astype(jnp.int32)
    return logits, sample_id


def transformer_decoder_wrapper_forward(params, inputs=None, sequence_length=None,
                                        memory=None, memory_sequence_length=None,
                                        **unused_infer_kwargs):
    """Mirrors TransformerDecoderWrapper.forward."""
    if inputs is not None:
        # train_greedy: TransformerDecoderOutput(logits, sample_id)
        # (sequence_length does not alter train-mode logits in the reference decoder)
        return gpt2_decoder_forward(params, inputs, memory, memory_sequence_length)
    # TODO(synk): infer_greedy autoregressive decoding (Helper/start_tokens/end_token,
    #             dynamic decode loop) is not implemented as a Pallas kernel.
    raise NotImplementedError("infer_greedy path not implemented")


# ---------------------------------------------------------------------------
# Deterministic parameter init (bf16 weights; LN/bias params pre-shaped (1,N) f32;
# fused QKV / KV weights; cached transposed embedding for the vocab projection)
# ---------------------------------------------------------------------------

def init_params(key, vocab, max_pos, hidden, num_heads, ffn, num_layers):
    def nrm(k, shape):
        return (0.02 * jax.random.normal(k, shape, dtype=jnp.float32)).astype(jnp.bfloat16)

    def zeros_row(n):
        return jnp.zeros((1, n), jnp.float32)

    def ones_row(n):
        return jnp.ones((1, n), jnp.float32)

    keys = jax.random.split(key, 2 + num_layers)
    word_emb = nrm(keys[0], (vocab, hidden))
    params = {
        "num_heads": num_heads,
        "word_emb": word_emb,
        "word_emb_t": word_emb.T,            # cached (H,V) for the logits matmul
        "pos_emb": nrm(keys[1], (max_pos, hidden)),
        "lnf_g": ones_row(hidden), "lnf_b": zeros_row(hidden),
        "layers": [],
    }
    for li in range(num_layers):
        lk = jax.random.split(keys[2 + li], 8)
        layer = {
            "ln1_g": ones_row(hidden), "ln1_b": zeros_row(hidden),
            "wqkv": nrm(lk[0], (hidden, 3 * hidden)), "bqkv": zeros_row(3 * hidden),
            "wo": nrm(lk[1], (hidden, hidden)), "bo": zeros_row(hidden),
            "lnc_g": ones_row(hidden), "lnc_b": zeros_row(hidden),
            "wq_c": nrm(lk[2], (hidden, hidden)), "bq_c": zeros_row(hidden),
            "wkv_c": nrm(lk[3], (hidden, 2 * hidden)), "bkv_c": zeros_row(2 * hidden),
            "wo_c": nrm(lk[4], (hidden, hidden)), "bo_c": zeros_row(hidden),
            "ln2_g": ones_row(hidden), "ln2_b": zeros_row(hidden),
            "w1": nrm(lk[5], (hidden, ffn)), "b1": zeros_row(ffn),
            "w2": nrm(lk[6], (ffn, hidden)), "b2": zeros_row(hidden),
        }
        params["layers"].append(layer)
    return params


# ---------------------------------------------------------------------------
# Demo
# ---------------------------------------------------------------------------

if __name__ == "__main__":
    key = jax.random.PRNGKey(0)
    pkey, ikey, mkey = jax.random.split(key, 3)

    B, T, S, H, NH, V, L = 2, 8, 8, 32, 4, 64, 2
    params = init_params(pkey, vocab=V, max_pos=16, hidden=H, num_heads=NH,
                         ffn=4 * H, num_layers=L)

    inputs = jax.random.randint(ikey, (B, T), 0, V, dtype=jnp.int32)
    sequence_length = jnp.array([T, T - 2], dtype=jnp.int32)
    memory = jax.random.normal(mkey, (B, S, H), dtype=jnp.float32)
    memory_sequence_length = jnp.array([S, S - 3], dtype=jnp.int32)

    logits, sample_id = transformer_decoder_wrapper_forward(
        params,
        inputs=inputs,
        sequence_length=sequence_length,
        memory=memory,
        memory_sequence_length=memory_sequence_length,
    )
    jax.block_until_ready((logits, sample_id))
    assert logits.shape == (B, T, V) and sample_id.shape == (B, T)
    assert bool(jnp.isfinite(logits).all())
    print("KERNEL_OK")
</pallas_src>

<mosaic_0001>
module attributes {stable_mosaic.version = 11 : i64} {
  func.func @_ln_matmul_kernel(%arg0: i32, %arg1: i32, %arg2: memref<16x32xbf16, #tpu.memory_space<vmem>>, %arg3: memref<1x32xf32, #tpu.memory_space<vmem>>, %arg4: memref<1x32xf32, #tpu.memory_space<vmem>>, %arg5: memref<32x96xbf16, #tpu.memory_space<vmem>>, %arg6: memref<1x96xf32, #tpu.memory_space<vmem>>, %arg7: memref<16x96xbf16, #tpu.memory_space<vmem>>, %arg8: memref<16x32xbf16, #tpu.memory_space<vmem>>) attributes {dimension_semantics = [#tpu.dimension_semantics<parallel>, #tpu.dimension_semantics<arbitrary>], iteration_bounds = array<i64: 1, 1>, scalar_prefetch = 0 : i64, scratch_operands = 1 : i64, tpu.core_type = #tpu.core_type<tc>, window_params = [{transform_indices = @transform_0, window_bounds = array<i64: 16, 32>}, {pipeline_mode = #tpu.pipeline_mode<synchronous>, transform_indices = @transform_1, window_bounds = array<i64: 1, 32>}, {pipeline_mode = #tpu.pipeline_mode<synchronous>, transform_indices = @transform_2, window_bounds = array<i64: 1, 32>}, {transform_indices = @transform_3, window_bounds = array<i64: 32, 96>}, {transform_indices = @transform_4, window_bounds = array<i64: 1, 96>}, {transform_indices = @transform_5, window_bounds = array<i64: 16, 96>}]} {
    %c0_i32 = arith.constant 0 : i32
    %0 = arith.cmpi eq, %arg1, %c0_i32 : i32
    %1 = arith.extui %0 : i1 to i32
    %c0_i32_0 = arith.constant 0 : i32
    %2 = arith.cmpi ne, %1, %c0_i32_0 : i32
    scf.if %2 {
      %c0_8 = arith.constant 0 : index
      %c0_9 = arith.constant 0 : index
      %11 = vector.load %arg2[%c0_8, %c0_9] : memref<16x32xbf16, #tpu.memory_space<vmem>>, vector<16x32xbf16>
      %12 = arith.extf %11 : vector<16x32xbf16> to vector<16x32xf32>
      %cst_10 = arith.constant dense<0.000000e+00> : vector<16xf32>
      %13 = vector.multi_reduction <add>, %12, %cst_10 [1] : vector<16x32xf32> to vector<16xf32>
      %14 = vector.shape_cast %13 : vector<16xf32> to vector<16x1xf32>
      %cst_11 = arith.constant 3.200000e+01 : f32
      %15 = vector.broadcast %cst_11 : f32 to vector<16x1xf32>
      %16 = arith.divf %14, %15 : vector<16x1xf32>
      %17 = vector.broadcast %16 : vector<16x1xf32> to vector<16x32xf32>
      %18 = arith.subf %12, %17 : vector<16x32xf32>
      %19 = arith.mulf %18, %18 : vector<16x32xf32>
      %cst_12 = arith.constant dense<0.000000e+00> : vector<16xf32>
      %20 = vector.multi_reduction <add>, %19, %cst_12 [1] : vector<16x32xf32> to vector<16xf32>
      %21 = vector.shape_cast %20 : vector<16xf32> to vector<16x1xf32>
      %cst_13 = arith.constant 3.200000e+01 : f32
      %22 = vector.broadcast %cst_13 : f32 to vector<16x1xf32>
      %23 = arith.divf %21, %22 : vector<16x1xf32>
      %24 = vector.broadcast %16 : vector<16x1xf32> to vector<16x32xf32>
      %25 = arith.subf %12, %24 : vector<16x32xf32>
      %cst_14 = arith.constant 9.99999974E-6 : f32
      %26 = vector.broadcast %cst_14 : f32 to vector<16x1xf32>
      %27 = arith.addf %23, %26 : vector<16x1xf32>
      %28 = math.rsqrt %27 : vector<16x1xf32>
      %29 = vector.broadcast %28 : vector<16x1xf32> to vector<16x32xf32>
      %30 = arith.mulf %25, %29 : vector<16x32xf32>
      %c0_15 = arith.constant 0 : index
      %c0_16 = arith.constant 0 : index
      %31 = vector.load %arg3[%c0_15, %c0_16] : memref<1x32xf32, #tpu.memory_space<vmem>>, vector<1x32xf32>
      %32 = vector.broadcast %31 : vector<1x32xf32> to vector<16x32xf32>
      %33 = arith.mulf %30, %32 : vector<16x32xf32>
      %c0_17 = arith.constant 0 : index
      %c0_18 = arith.constant 0 : index
      %34 = vector.load %arg4[%c0_17, %c0_18] : memref<1x32xf32, #tpu.memory_space<vmem>>, vector<1x32xf32>
      %35 = vector.broadcast %34 : vector<1x32xf32> to vector<16x32xf32>
      %36 = arith.addf %33, %35 : vector<16x32xf32>
      %37 = arith.truncf %36 : vector<16x32xf32> to vector<16x32xbf16>
      %c0_19 = arith.constant 0 : index
      %c0_20 = arith.constant 0 : index
      %38 = vector.load %arg8[%c0_19, %c0_20] : memref<16x32xbf16, #tpu.memory_space<vmem>>, vector<16x32xbf16>
      tpu.vector_store %arg8[%c0_19, %c0_20], %37 {strides = array<i32>} : memref<16x32xbf16, #tpu.memory_space<vmem>>, vector<16x32xbf16>,
    } else {
    }
    %c0 = arith.constant 0 : index
    %c0_1 = arith.constant 0 : index
    %3 = vector.load %arg8[%c0, %c0_1] : memref<16x32xbf16, #tpu.memory_space<vmem>>, vector<16x32xbf16>
    %c0_2 = arith.constant 0 : index
    %c0_3 = arith.constant 0 : index
    %4 = vector.load %arg5[%c0_2, %c0_3] : memref<32x96xbf16, #tpu.memory_space<vmem>>, vector<32x96xbf16>
    %cst = arith.constant dense<0.000000e+00> : vector<16x96xf32>
    %5 = tpu.matmul %3, %4, %cst {dimension_numbers = #tpu.dot_dimension_numbers<[1], [0], [0], [1], [0, 0, 1, 1], [], []>} : vector<16x32xbf16>, vector<32x96xbf16>, vector<16x96xf32> -> vector<16x96xf32>
    %c0_4 = arith.constant 0 : index
    %c0_5 = arith.constant 0 : index
    %6 = vector.load %arg6[%c0_4, %c0_5] : memref<1x96xf32, #tpu.memory_space<vmem>>, vector<1x96xf32>
    %7 = vector.broadcast %6 : vector<1x96xf32> to vector<16x96xf32>
    %8 = arith.addf %5, %7 : vector<16x96xf32>
    %9 = arith.truncf %8 : vector<16x96xf32> to vector<16x96xbf16>
    %c0_6 = arith.constant 0 : index
    %c0_7 = arith.constant 0 : index
    %10 = vector.load %arg7[%c0_6, %c0_7] : memref<16x96xbf16, #tpu.memory_space<vmem>>, vector<16x96xbf16>
    tpu.vector_store %arg7[%c0_6, %c0_7], %9 {strides = array<i32>} : memref<16x96xbf16, #tpu.memory_space<vmem>>, vector<16x96xbf16>,
    return
  }
  func.func @transform_0(%arg0: i32, %arg1: i32) -> (i32, i32) {
    %c0_i32 = arith.constant 0 : i32
    %c0_i32_0 = arith.constant 0 : i32
    return %arg0, %c0_i32 : i32, i32
  }
  func.func @transform_1(%arg0: i32, %arg1: i32) -> (i32, i32) {
    %c0_i32 = arith.constant 0 : i32
    %c0_i32_0 = arith.constant 0 : i32
    %c0_i32_1 = arith.constant 0 : i32
    return %c0_i32, %c0_i32_0 : i32, i32
  }
  func.func @transform_2(%arg0: i32, %arg1: i32) -> (i32, i32) {
    %c0_i32 = arith.constant 0 : i32
    %c0_i32_0 = arith.constant 0 : i32
    %c0_i32_1 = arith.constant 0 : i32
    return %c0_i32, %c0_i32_0 : i32, i32
  }
  func.func @transform_3(%arg0: i32, %arg1: i32) -> (i32, i32) {
    %c0_i32 = arith.constant 0 : i32
    %c0_i32_0 = arith.constant 0 : i32
    return %c0_i32, %arg1 : i32, i32
  }
  func.func @transform_4(%arg0: i32, %arg1: i32) -> (i32, i32) {
    %c0_i32 = arith.constant 0 : i32
    %c0_i32_0 = arith.constant 0 : i32
    return %c0_i32, %arg1 : i32, i32
  }
  func.func @transform_5(%arg0: i32, %arg1: i32) -> (i32, i32) {
    %c0_i32 = arith.constant 0 : i32
    return %arg0, %arg1 : i32, i32
  }
}

</mosaic_0001>

<llo_original>
// kernel: tpu_custom_call.1
$region0: #{tpu_custom_call.1}
  #allocation0 [shape = 'u32[]', space=smem, size = 0x4, offset = 0x4, fixed_abs, tag = 'smem constant byte address 0x4 - core index']
  #allocation1 [shape = 'u32[72,128]{1,0:T(1,128)}', space=vmem, size = 0x9000, scoped, tag = 'internal scratch']
  #allocation2 [shape = 'bf16[16,32]{1,0:T(8,128)(2,1)}', space=vmem, size = 0x1000, scoped, tag = 'scratch operand']
  %s0 = inlined_call_operand.hbm [shape: bf16[16,32], index: 0, kind: input, shape index: {}]
  %s1 = inlined_call_operand.hbm [shape: f32[1,32], index: 1, kind: input, shape index: {}]
  %s2 = inlined_call_operand.vmem [shape: f32[1,32], index: 2, kind: input, shape index: {}]
  %s3 = inlined_call_operand.hbm [shape: bf16[32,96], index: 3, kind: input, shape index: {}]
  %s4 = inlined_call_operand.vmem [shape: f32[1,96], index: 4, kind: input, shape index: {}]
  %s5 = inlined_call_operand.hbm [shape: bf16[16,96], index: 5, kind: output, shape index: {}]
  %s6 = sld [smem:[#allocation0]]
  $region46: #{tpu_custom_call.1} parent=0
    _
  %s8 = ssub.s32 1, %s6
  %s9 = scalar_select 0, %s8, %s6
  $region1: #{tpu_custom_call.1} parent=0
    #allocation3 [shape = 'u8[4096]{0}', space=vmem, size = 0x1000, scoped, tag = 'input window, operand 0, single buffered']
    #allocation4 [shape = 's32[1]{0}', space=sflag, size = 0x4, scoped, tag = 'scoped memory for tpu_custom_call.1']
    #allocation5 [shape = 's32[1]{0}', space=sflag, size = 0x4, scoped, tag = 'scoped memory for tpu_custom_call.1']
    #allocation6 [shape = 'u8[512]{0}', space=vmem, size = 0x400, scoped, tag = 'input window, operand 1, single buffered']
    #allocation7 [shape = 's32[1]{0}', space=sflag, size = 0x4, scoped, tag = 'scoped memory for tpu_custom_call.1']
    #allocation8 [shape = 'u8[8192]{0}', space=vmem, size = 0x2000, scoped, tag = 'input window, operand 3, single buffered']
    #allocation9 [shape = 'u8[4096]{0}', space=vmem, size = 0x1000, scoped, tag = 'output window, operand 0, single buffered']
    %10 = vsyncpa [#allocation4], 0
    %11 = vsyncpa [#allocation7], 0
    %12 = vsyncpa [#allocation5], 0
    // Predicated region
    $region2: #{tpu_custom_call.1} parent=1 // pred_check
      _
    $region3: #{tpu_custom_call.1} parent=1 // pred_check_branch
      %14 = sbr.rel (0) target = $region5
    $region4: #{tpu_custom_call.1} parent=1 // pred_region
      %16 = vsyncadd [#allocation4], 0
      %s17 = sshll.u32 %s0, 4
      %s18 = int_to_ptr.hbm [resolvable:$true] %s17
      %s19 = sshll.u32 [#allocation3], 4
      %s20 = int_to_ptr.vmem [resolvable:$true] %s19
      %25 = dma.hbm_to_vmem [thread:$0]  %s18, 128, %s20, [#allocation4], 64, 64, 4
    $region5: #{tpu_custom_call.1} parent=1 // pred_fallthru
      _
    // Predicated region
    $region6: #{tpu_custom_call.1} parent=1 // pred_check
      _
    $region7: #{tpu_custom_call.1} parent=1 // pred_check_branch
      %27 = sbr.rel (0) target = $region9
    $region8: #{tpu_custom_call.1} parent=1 // pred_region
      %29 = vsyncadd [#allocation7], 0
      %s31 = sshll.u32 %s1, 4
      %s32 = int_to_ptr.hbm [resolvable:$true] %s31
      %s33 = sshll.u32 [#allocation6], 4
      %s34 = int_to_ptr.vmem [resolvable:$true] %s33
      %36 = dma.hbm_to_vmem [thread:$0]  %s32, 16, %s34, [#allocation7]
    $region9: #{tpu_custom_call.1} parent=1 // pred_fallthru
      _
    // Predicated region
    $region10: #{tpu_custom_call.1} parent=1 // pred_check
      _
    $region11: #{tpu_custom_call.1} parent=1 // pred_check_branch
      %38 = sbr.rel (0) target = $region13
    $region12: #{tpu_custom_call.1} parent=1 // pred_region
      _
    $region13: #{tpu_custom_call.1} parent=1 // pred_fallthru
      _
    // Predicated region
    $region14: #{tpu_custom_call.1} parent=1 // pred_check
      _
    $region15: #{tpu_custom_call.1} parent=1 // pred_check_branch
      %40 = sbr.rel (0) target = $region17
    $region16: #{tpu_custom_call.1} parent=1 // pred_region
      %42 = vsyncadd [#allocation7], 0
      %s43 = sshll.u32 %s3, 4
      %s44 = int_to_ptr.hbm [resolvable:$true] %s43
      %s45 = sshll.u32 [#allocation8], 4
      %s46 = int_to_ptr.vmem [resolvable:$true] %s45
      %51 = dma.hbm_to_vmem [thread:$0]  %s44, 256, %s46, [#allocation7], 64, 64, 4
    $region17: #{tpu_custom_call.1} parent=1 // pred_fallthru
      _
    // Predicated region
    $region18: #{tpu_custom_call.1} parent=1 // pred_check
      _
    $region19: #{tpu_custom_call.1} parent=1 // pred_check_branch
      %53 = sbr.rel (0) target = $region21
    $region20: #{tpu_custom_call.1} parent=1 // pred_region
      _
    $region21: #{tpu_custom_call.1} parent=1 // pred_fallthru
      _
    // Predicated region
    $region22: #{tpu_custom_call.1} parent=1 // pred_check
      _
    $region23: #{tpu_custom_call.1} parent=1 // pred_check_branch
      %55 = sbr.rel (0) target = $region25
    $region24: #{tpu_custom_call.1} parent=1 // pred_region
      %57 = dma.done [#allocation4], 128
    $region25: #{tpu_custom_call.1} parent=1 // pred_fallthru
      _
    // Predicated region
    $region26: #{tpu_custom_call.1} parent=1 // pred_check
      _
    $region27: #{tpu_custom_call.1} parent=1 // pred_check_branch
      %59 = sbr.rel (0) target = $region29
    $region28: #{tpu_custom_call.1} parent=1 // pred_region
      %61 = dma.done [#allocation7], 16
    $region29: #{tpu_custom_call.1} parent=1 // pred_fallthru
      _
    // Predicated region
    $region30: #{tpu_custom_call.1} parent=1 // pred_check
      _
    $region31: #{tpu_custom_call.1} parent=1 // pred_check_branch
      %63 = sbr.rel (0) target = $region33
    $region32: #{tpu_custom_call.1} parent=1 // pred_region
      %65 = dma.done [#allocation7], 256
    $region33: #{tpu_custom_call.1} parent=1 // pred_fallthru
      _
    %p67 = scmp.eq.s32.totalorder 0, 0
    // Predicated region
    $region34: #{tpu_custom_call.1} parent=1 // pred_check
      %p68 = pneg %p67
    $region35: #{tpu_custom_call.1} parent=1 // pred_check_branch
      %70 = sbr.rel (%p68) target = $region37
    $region36: #{tpu_custom_call.1} parent=1 // pred_region
      %v71 = vld [vmem:[#allocation3] sm:$0xf]
      %v72 = vld [vmem:[#allocation3 + $0x4] sm:$0xf]
      %v73 = vunpack.c.l.bf16 %v71
      %v74 = vunpack.c.l.bf16 %v72
      %vm75 = vcmask 261120
      %v76 = vsel %vm75, %v73, 0.0
      %77 = vadd.xlane.f32.xlu0 %v76
      %v78 = vpop.xlane.xlu0 %77
      %v79 = vsel %vm75, %v74, 0.0
      %80 = vadd.xlane.f32.xlu0 %v79
      %v81 = vpop.xlane.xlu0 %80
      %v82 = vrcp.pop 32.0
      %v83 = vmul.f32 32.0, %v82
      %v84 = vsub.f32 1.0, %v83
      %v85 = vmul.f32 %v82, %v84
      %v86 = vadd.f32 %v82, %v85
      %vm87 = vweird.f32 %v82
      %v88 = vsel %vm87, %v82, %v86
      %v89 = vmul.f32 %v78, %v88
      %v90 = vmul.f32 %v81, %v88
      %v91 = vsub.f32 %v73, %v89
      %v92 = vsub.f32 %v74, %v90
      %v93 = vmul.f32 %v91, %v91
      %v94 = vmul.f32 %v92, %v92
      %v95 = vsel %vm75, %v93, 0.0
      %96 = vadd.xlane.f32.xlu0 %v95
      %v97 = vpop.xlane.xlu0 %96
      %v98 = vsel %vm75, %v94, 0.0
      %99 = vadd.xlane.f32.xlu0 %v98
      %v100 = vpop.xlane.xlu0 %99
      %v101 = vmul.f32 %v97, %v88
      %v102 = vmul.f32 %v100, %v88
      %v103 = vadd.f32 %v101, 1e-05
      %v104 = vadd.f32 %v102, 1e-05
      %v105 = vrsqrt.pop %v103
      %v106 = vmul.f32 %v105, %v103
      %v107 = vmul.f32 %v106, %v105
      %v108 = vmul.f32 0.5, %v107
      %v109 = vsub.f32 1.5, %v108
      %v110 = vmul.f32 %v105, %v109
      %vm111 = vweird.f32 %v103
      %vm112 = vweird.f32 %v105
      %vm113 = vmor %vm111, %vm112
      %v114 = vsel %vm113, %v105, %v110
      %v115 = vrsqrt.pop %v104
      %v116 = vmul.f32 %v115, %v104
      %v117 = vmul.f32 %v116, %v115
      %v118 = vmul.f32 0.5, %v117
      %v119 = vsub.f32 1.5, %v118
      %v120 = vmul.f32 %v115, %v119
      %vm121 = vweird.f32 %v104
      %vm122 = vweird.f32 %v115
      %vm123 = vmor %vm121, %vm122
      %v124 = vsel %vm123, %v115, %v120
      %v125 = vmul.f32 %v91, %v114
      %v126 = vmul.f32 %v92, %v124
      %v127 = vld [vmem:[#allocation6] sm:$0x1]
      %v129 = vperm.slane %v127, 0
      %v131 = vmul.f32 %v125, %v129
      %v132 = vmul.f32 %v126, %v129
      %v133 = vld [vmem:[%s2] sm:$0x1]
      %v135 = vperm.slane %v133, 0
      %v137 = vadd.f32 %v131, %v135
      %v138 = vadd.f32 %v132, %v135
      %v139 = vpack.c.bf16 %v137, %v137
      %v140 = vpack.c.bf16 %v138, %v138
      %vm141 = vcmask 257024
      %142 = vst.msk [vmem:[#allocation2] sm:$0xf] %vm141, %v139
      %143 = vst.msk [vmem:[#allocation2 + $0x4] sm:$0xf] %vm141, %v140
    $region37: #{tpu_custom_call.1} parent=1 // pred_fallthru
      _
    %v144 = vld [vmem:[#allocation2] sm:$0xf]
    %v145 = vld [vmem:[#allocation2 + $0x4] sm:$0xf]
    %v146 = vld [vmem:[#allocation8] sm:$0xf]
    %v147 = vld [vmem:[#allocation8 + $0x4] sm:$0xf]
    %v148 = vld [vmem:[#allocation8 + $0x8] sm:$0xf]
    %v149 = vld [vmem:[#allocation8 + $0xc] sm:$0xf]
    %v150 = vld [vmem:[%s4] sm:$0x1]
    %v152 = vperm.slane %v150, 0
    %v156 = vunpack.c.l.b16 %v144
    %v157 = vunpack.c.l.b16 %v145
    %v158 = vpack.c.b16 %v157, %v156
    %v163 = vunpack.c.l.b16 %v146
    %v164 = vunpack.c.l.b16 %v147
    %v165 = vunpack.c.l.b16 %v148
    %v166 = vunpack.c.l.b16 %v149
    %v167 = vpack.c.b16 %v164, %v163
    %v168 = vpack.c.b16 %v166, %v165
    %vm171 = vcmask 261120
    %v173 = vsel %vm171, %v158, 0
    %175 = vmatpush.bf16.msra.mxu0 0
    %176 = vmatpush.bf16.msra.mxu0 0
    %177 = vmatpush.bf16.msra.mxu0 0
    %178 = vmatpush.bf16.msra.mxu0 0
    %179 = vmatpush.bf16.msra.mxu0 0
    %180 = vmatpush.bf16.msra.mxu0 0
    %181 = vmatpush.bf16.msra.mxu0 %v168
    %182 = vmatpush.bf16.msra.mxu0 %v167
    %183 = vmatmul.bf16.gmra.mxu0 %v173
    %v184 = vpop.f32.mrf.mxu0
    %v185 = vadd.f32 %v152, %v184
    %v186 = vpop.f32.mrf.mxu0
    %v187 = vadd.f32 %v152, %v186
    %188 = vdwg.mxu0
    %v189 = vpack.c.bf16 %v185, %v185
    %v190 = vpack.c.bf16 %v187, %v187
    %vm191 = vcmask 781312
    %192 = vst.msk [vmem:[#allocation9] sm:$0xf] %vm191, %v189
    %193 = vst.msk [vmem:[#allocation9 + $0x4] sm:$0xf] %vm191, %v190
    // Predicated region
    $region38: #{tpu_custom_call.1} parent=1 // pred_check
      _
    $region39: #{tpu_custom_call.1} parent=1 // pred_check_branch
      %195 = sbr.rel (0) target = $region41
    $region40: #{tpu_custom_call.1} parent=1 // pred_region
      %197 = vsyncadd [#allocation5], 0
      %s198 = sshll.u32 [#allocation9], 4
      %s199 = int_to_ptr.vmem [resolvable:$true] %s198
      %s200 = sshll.u32 %s5, 4
      %s201 = int_to_ptr.hbm [resolvable:$true] %s200
      %206 = dma.vmem_to_hbm [thread:$0]  %s199, 128, %s201, [#allocation5], 64, 64, 4
    $region41: #{tpu_custom_call.1} parent=1 // pred_fallthru
      _
    // Predicated region
    $region42: #{tpu_custom_call.1} parent=1 // pred_check
      _
    $region43: #{tpu_custom_call.1} parent=1 // pred_check_branch
      %208 = sbr.rel (0) target = $region45
    $region44: #{tpu_custom_call.1} parent=1 // pred_region
      %210 = dma.done [#allocation5], 128
    $region45: #{tpu_custom_call.1} parent=1 // pred_fallthru
      _
    %211 = vsyncpa [#allocation4], 1
    %212 = vsyncpa [#allocation7], 1
    %213 = vsyncpa [#allocation5], 1

</llo_original>
